<compile_context>
chip_gen: v5e
topology: v5e:2x2
jax: 0.10.0
libtpu: 0.0.40
codegen_flags: <defaults>
</compile_context>

<pallas_src>
import functools

import jax
import jax.numpy as jnp
from jax.experimental import pallas as pl
from jax.experimental.pallas import tpu as pltpu

_C1 = 0.7978845608028654                # sqrt(2/pi)
_C2 = 0.7978845608028654 * 0.044715    # sqrt(2/pi) * 0.044715

_MIN_PALLAS_BYTES = 256 * 1024          # below this, single-block launch overhead dominates
_LANE_WIDTH_CANDIDATES = (2048, 1024, 512, 256, 128)


def _gelu_math(x):
    """Tanh-approximation GELU, identical to the PyTorch module's forward()."""
    xf = x.astype(jnp.float32)
    inner = xf * (_C1 + _C2 * xf * xf)          # == c1*(x + 0.044715*x^3)
    return (0.5 * xf * (1.0 + jnp.tanh(inner))).astype(x.dtype)


def _gelu_kernel(x_ref, o_ref):
    o_ref[...] = _gelu_math(x_ref[...])


@functools.lru_cache(maxsize=1)
def _tuning():
    """Returns (target_block_bytes, vmem_limit_bytes) tuned per TPU generation."""
    try:
        vmem_cap = int(pltpu.get_tpu_info().vmem_capacity_bytes)
    except Exception:
        # Unknown hardware / query unavailable: stay under every scoped-VMEM default.
        return 2 << 20, None
    if vmem_cap <= (64 << 20):
        # v7x-class: 64 MiB VMEM, ~3.2 TB/s HBM.  8 MiB blocks amortize the
        # ~0.35 us per-step overhead; 4x block (in+out, double-buffered) ~= 32 MiB,
        # so raise the scoped limit explicitly while staying well under 64 MiB.
        return 8 << 20, 48 << 20
    # v5e / v6e (128 MiB physical VMEM): 4 MiB blocks, explicit 32 MiB scoped limit
    # (covers v5e's 16 MiB default; far below physical capacity on both).
    return 4 << 20, 32 << 20


def _gelu_pallas_2d(x2d, block_rows, vmem_limit_bytes):
    rows, width = x2d.shape
    grid = (pl.cdiv(rows, block_rows),)
    return pl.pallas_call(
        _gelu_kernel,
        out_shape=jax.ShapeDtypeStruct((rows, width), x2d.dtype),
        grid_spec=pltpu.PrefetchScalarGridSpec(
            num_scalar_prefetch=0,
            grid=grid,
            in_specs=[pl.BlockSpec((block_rows, width), lambda i: (i, 0))],
            out_specs=pl.BlockSpec((block_rows, width), lambda i: (i, 0)),
        ),
        compiler_params=pltpu.CompilerParams(
            # Shards the grid across both TensorCores on v7x; no-op on v5e/v6e.
            dimension_semantics=("parallel",),
            vmem_limit_bytes=vmem_limit_bytes,
        ),
    )(x2d)


def gelu(x: jax.Array, *, force_pallas: bool = False) -> jax.Array:
    """Elementwise tanh-approximation GELU (Hendrycks & Gimpel, 2016)."""
    n = x.size
    if n == 0:
        return x
    itemsize = jnp.dtype(x.dtype).itemsize

    # Tiny inputs: a single-block pallas_call is dominated by launch/DMA fixed
    # overhead; plain XLA fusion is as fast or faster.
    if not force_pallas and n * itemsize < _MIN_PALLAS_BYTES:
        return _gelu_math(x)

    target_block_bytes, vmem_limit_bytes = _tuning()

    flat = jnp.ravel(x)
    tail = n % 128
    bulk = n - tail
    if bulk == 0:
        # Fewer than 128 elements total: nothing lane-dense to stream.
        return _gelu_math(x)

    # Widest lane-dense last dim (multiple of 128) dividing the bulk -> unmasked vst.
    width = next(w for w in _LANE_WIDTH_CANDIDATES if bulk % w == 0)
    rows = bulk // width

    # Block rows: ~target_block_bytes per block, multiple of 8 sublanes.  For
    # inputs that would fit in one block, still split into >= 2 blocks (when the
    # row count allows it) so v7x's two TensorCores both get work.
    target_rows = max(8, (target_block_bytes // (width * itemsize) // 8) * 8)
    if rows <= target_rows:
        if rows >= 16:
            block_rows = max(8, (rows // 2 // 8) * 8)
        else:
            block_rows = rows          # full-extent single block (small input)
    else:
        block_rows = target_rows
    # Ragged last grid block is handled by Pallas masked partial writes.

    out_bulk = _gelu_pallas_2d(
        flat[:bulk].reshape(rows, width), block_rows, vmem_limit_bytes
    ).reshape(-1)

    if tail:
        # Rare ragged path: <128 trailing elements computed with plain jnp instead
        # of a whole-array pad + slice (which cost two extra full HBM passes).
        out_flat = jnp.concatenate([out_bulk, _gelu_math(flat[bulk:])])
    else:
        out_flat = out_bulk
    return out_flat.reshape(x.shape)


def gelu_ref(x):
    """Reference: literal transcription of the PyTorch module's forward()."""
    xf = x.astype(jnp.float32)
    return (0.5 * xf * (1.0 + jnp.tanh(0.7978845608028654 *
                                       (xf + 0.044715 * xf ** 3)))).astype(x.dtype)


if __name__ == "__main__":
    key = jax.random.PRNGKey(0)
    k1, k2 = jax.random.split(key)

    # Canonical small NCHW activation map the PyTorch module would see.
    x = jax.random.normal(k1, (2, 4, 16, 16), dtype=jnp.float32)

    # Force the Pallas path so the kernel itself is exercised on this small input.
    y_pallas = gelu(x, force_pallas=True)
    jax.block_until_ready(y_pallas)
    # Production path for this size takes the tiny-input jnp fast path.
    y_fast = gelu(x)
    jax.block_until_ready(y_fast)

    y_ref = gelu_ref(x)
    assert y_pallas.shape == x.shape and y_pallas.dtype == x.dtype
    assert jnp.allclose(y_pallas, y_ref, atol=1e-5, rtol=1e-5)
    assert jnp.allclose(y_fast, y_ref, atol=1e-5, rtol=1e-5)

    # Ragged total size (not a multiple of 128): 128-aligned bulk goes through the
    # kernel, the <128-element tail through plain jnp.
    x_ragged = jax.random.normal(k2, (2, 4, 9, 13), dtype=jnp.float32)
    y_ragged = gelu(x_ragged, force_pallas=True)
    jax.block_until_ready(y_ragged)
    assert y_ragged.shape == x_ragged.shape
    assert jnp.allclose(y_ragged, gelu_ref(x_ragged), atol=1e-5, rtol=1e-5)

    print("KERNEL_OK")
</pallas_src>

<mosaic_0001>
module attributes {stable_mosaic.version = 11 : i64} {
  func.func @_gelu_kernel(%arg0: i32, %arg1: memref<1x2048xf32, #tpu.memory_space<vmem>>, %arg2: memref<1x2048xf32, #tpu.memory_space<vmem>>) attributes {dimension_semantics = [#tpu.dimension_semantics<parallel>], iteration_bounds = array<i64: 1>, scalar_prefetch = 0 : i64, scratch_operands = 0 : i64, tpu.core_type = #tpu.core_type<tc>, window_params = [{transform_indices = @transform_0, window_bounds = array<i64: 1, 2048>}, {transform_indices = @transform_1, window_bounds = array<i64: 1, 2048>}]} {
    %c0 = arith.constant 0 : index
    %c0_0 = arith.constant 0 : index
    %0 = vector.load %arg1[%c0, %c0_0] : memref<1x2048xf32, #tpu.memory_space<vmem>>, vector<1x2048xf32>
    %cst = arith.constant 0.0356774069 : f32
    %1 = vector.broadcast %cst : f32 to vector<1x2048xf32>
    %2 = arith.mulf %1, %0 : vector<1x2048xf32>
    %3 = arith.mulf %2, %0 : vector<1x2048xf32>
    %cst_1 = arith.constant 0.797884583 : f32
    %4 = vector.broadcast %cst_1 : f32 to vector<1x2048xf32>
    %5 = arith.addf %4, %3 : vector<1x2048xf32>
    %6 = arith.mulf %0, %5 : vector<1x2048xf32>
    %cst_2 = arith.constant 5.000000e-01 : f32
    %7 = vector.broadcast %cst_2 : f32 to vector<1x2048xf32>
    %8 = arith.mulf %7, %0 : vector<1x2048xf32>
    %9 = math.tanh %6 : vector<1x2048xf32>
    %cst_3 = arith.constant 1.000000e+00 : f32
    %10 = vector.broadcast %cst_3 : f32 to vector<1x2048xf32>
    %11 = arith.addf %10, %9 : vector<1x2048xf32>
    %12 = arith.mulf %8, %11 : vector<1x2048xf32>
    %c0_4 = arith.constant 0 : index
    %c0_5 = arith.constant 0 : index
    %13 = vector.load %arg2[%c0_4, %c0_5] : memref<1x2048xf32, #tpu.memory_space<vmem>>, vector<1x2048xf32>
    tpu.vector_store %arg2[%c0_4, %c0_5], %12 {strides = array<i32>} : memref<1x2048xf32, #tpu.memory_space<vmem>>, vector<1x2048xf32>,
    return
  }
  func.func @transform_0(%arg0: i32) -> (i32, i32) {
    %c0_i32 = arith.constant 0 : i32
    %c0_i32_0 = arith.constant 0 : i32
    return %arg0, %c0_i32 : i32, i32
  }
  func.func @transform_1(%arg0: i32) -> (i32, i32) {
    %c0_i32 = arith.constant 0 : i32
    %c0_i32_0 = arith.constant 0 : i32
    return %arg0, %c0_i32 : i32, i32
  }
}

</mosaic_0001>

<llo_original>
// kernel: tpu_custom_call.1
$region0: #{tpu_custom_call.1}
  #allocation0 [shape = 'u32[]', space=smem, size = 0x4, offset = 0x4, fixed_abs, tag = 'smem constant byte address 0x4 - core index']
  #allocation1 [shape = 'u32[72,128]{1,0:T(1,128)}', space=vmem, size = 0x9000, scoped, tag = 'internal scratch']
  %s0 = inlined_call_operand.hbm [shape: f32[1,2048], index: 0, kind: input, shape index: {}]
  %s1 = inlined_call_operand.hbm [shape: f32[1,2048], index: 1, kind: output, shape index: {}]
  %s2 = sld [smem:[#allocation0]]
  $region18: #{tpu_custom_call.1} parent=0
    _
  %s4 = ssub.s32 1, %s2
  %s5 = scalar_select 0, %s4, %s2
  $region1: #{tpu_custom_call.1} parent=0
    #allocation2 [shape = 'u8[8192]{0}', space=vmem, size = 0x2000, scoped, tag = 'input window, operand 0, single buffered']
    #allocation3 [shape = 's32[1]{0}', space=sflag, size = 0x4, scoped, tag = 'scoped memory for tpu_custom_call.1']
    #allocation4 [shape = 's32[1]{0}', space=sflag, size = 0x4, scoped, tag = 'scoped memory for tpu_custom_call.1']
    #allocation5 [shape = 'u8[8192]{0}', space=vmem, size = 0x2000, scoped, tag = 'output window, operand 0, single buffered']
    %6 = vsyncpa [#allocation3], 0
    %7 = vsyncpa [#allocation4], 0
    // Predicated region
    $region2: #{tpu_custom_call.1} parent=1 // pred_check
      _
    $region3: #{tpu_custom_call.1} parent=1 // pred_check_branch
      %9 = sbr.rel (0) target = $region5
    $region4: #{tpu_custom_call.1} parent=1 // pred_region
      %11 = vsyncadd [#allocation3], 0
      %s13 = sshll.u32 %s0, 4
      %s14 = int_to_ptr.hbm [resolvable:$true] %s13
      %s15 = sshll.u32 [#allocation2], 4
      %s16 = int_to_ptr.vmem [resolvable:$true] %s15
      %18 = dma.hbm_to_vmem [thread:$0]  %s14, 256, %s16, [#allocation3]
    $region5: #{tpu_custom_call.1} parent=1 // pred_fallthru
      _
    // Predicated region
    $region6: #{tpu_custom_call.1} parent=1 // pred_check
      _
    $region7: #{tpu_custom_call.1} parent=1 // pred_check_branch
      %20 = sbr.rel (0) target = $region9
    $region8: #{tpu_custom_call.1} parent=1 // pred_region
      %22 = dma.done [#allocation3], 256
    $region9: #{tpu_custom_call.1} parent=1 // pred_fallthru
      _
    %v23 = vld [vmem:[#allocation2] sm:$0xff]
    %v24 = vld [vmem:[#allocation2 + $0x8] sm:$0xff]
    %v25 = vmul.f32 %v23, 0.035677407
    %v26 = vmul.f32 %v24, 0.035677407
    %v27 = vmul.f32 %v25, %v23
    %v28 = vmul.f32 %v26, %v24
    %v29 = vadd.f32 %v27, 0.7978846
    %v30 = vadd.f32 %v28, 0.7978846
    %v31 = vmul.f32 %v23, %v29
    %v32 = vmul.f32 %v24, %v30
    %v33 = vmul.f32 %v23, 0.5
    %v34 = vmul.f32 %v24, 0.5
    %v35 = vtanh.pop %v31
    %v36 = vtanh.pop %v32
    %v37 = vadd.f32 %v35, 1.0
    %v38 = vadd.f32 %v36, 1.0
    %v39 = vmul.f32 %v33, %v37
    %v40 = vmul.f32 %v34, %v38
    %41 = vst [vmem:[#allocation5] sm:$0xff] %v39
    %42 = vst [vmem:[#allocation5 + $0x8] sm:$0xff] %v40
    // Predicated region
    $region10: #{tpu_custom_call.1} parent=1 // pred_check
      _
    $region11: #{tpu_custom_call.1} parent=1 // pred_check_branch
      %44 = sbr.rel (0) target = $region13
    $region12: #{tpu_custom_call.1} parent=1 // pred_region
      %46 = vsyncadd [#allocation4], 0
      %s48 = sshll.u32 [#allocation5], 4
      %s49 = int_to_ptr.vmem [resolvable:$true] %s48
      %s50 = sshll.u32 %s1, 4
      %s51 = int_to_ptr.hbm [resolvable:$true] %s50
      %53 = dma.vmem_to_hbm [thread:$0]  %s49, 256, %s51, [#allocation4]
    $region13: #{tpu_custom_call.1} parent=1 // pred_fallthru
      _
    // Predicated region
    $region14: #{tpu_custom_call.1} parent=1 // pred_check
      _
    $region15: #{tpu_custom_call.1} parent=1 // pred_check_branch
      %55 = sbr.rel (0) target = $region17
    $region16: #{tpu_custom_call.1} parent=1 // pred_region
      %57 = dma.done [#allocation4], 256
    $region17: #{tpu_custom_call.1} parent=1 // pred_fallthru
      _
    %58 = vsyncpa [#allocation3], 1
    %59 = vsyncpa [#allocation4], 1

</llo_original>
